<compile_context>
chip_gen: v7x
topology: tpu7x:2x2x1
jax: 0.10.0
libtpu: 0.0.40
codegen_flags: <defaults>
</compile_context>

<pallas_src>
import jax
import jax.numpy as jnp
from jax import lax
from jax.experimental import pallas as pl
from jax.experimental.pallas import tpu as pltpu

# --- small, self-consistent config (stand-in for config.*) ---
L = 8      # config.music.L   : notes per sample
EMB = 16   # config.note.dim  : embedding dim       -> L*EMB = 128
SIZ = 40   # config.note.size : note vocabulary size
M = 32     # config.M         : output dim
B = 8      # demo batch size


def music_encoder_kernel(ids_ref, tempo_ref, proj_ref, wtb_ref, out_ref):
    """One batch tile of: sigmoid([tempo | emb(note)] @ W.T + b).

    ids_ref   : (TB, L)     int32  note indices
    tempo_ref : (TB, 1)     f32
    proj_ref  : (L*SIZ, M)  f32    folded emb @ W_note (see prepare_params)
    wtb_ref   : (2, M)      f32    row 0 = tempo weight column, row 1 = bias
    out_ref   : (TB, M)     f32
    """
    tb = ids_ref.shape[0]
    ids = ids_ref[...]                                           # (TB, L)

    # One-hot over the flattened (note-position, vocab) axis, built on the
    # VPU: column l*SIZ + ids[b, l] is 1.  L static 2-D compares, no gather.
    j = lax.broadcasted_iota(jnp.int32, (tb, L * SIZ), 1)        # lane iota
    one_hot = (j == ids[:, 0:1]).astype(jnp.float32)
    for l in range(1, L):
        one_hot = one_hot + (j == (ids[:, l:l + 1] + l * SIZ)).astype(jnp.float32)

    # Single MXU matmul: (TB, L*SIZ) @ (L*SIZ, M), f32 accumulate.
    acc = jnp.dot(one_hot, proj_ref[...], preferred_element_type=jnp.float32)

    # Tempo column + bias on the VPU, sigmoid on the EUP.
    wtb = wtb_ref[...]                                           # (2, M)
    acc = acc + tempo_ref[...] * wtb[0:1, :] + wtb[1:2, :]
    out_ref[...] = jax.nn.sigmoid(acc).astype(out_ref.dtype)


def prepare_params(emb_table, W, b):
    """One-time (parameter-load-time) re-layout; NOT in the per-call path.

    emb_table : (SIZ, EMB) f32     nn.Embedding weight
    W         : (M, 1+L*EMB) f32   torch nn.Linear weight
    b         : (M,) f32           torch nn.Linear bias
    Returns
      proj : (L*SIZ, M) f32  proj[l*SIZ + s] = emb[s] @ W[:, 1+l*EMB : 1+(l+1)*EMB].T
      wtb  : (2, M)     f32  row 0 = W[:, 0] (tempo column), row 1 = b
    """
    w_note = jnp.transpose(W[:, 1:]).reshape(L, EMB, M)          # (L, EMB, M)
    proj = jnp.einsum("se,lem->lsm", emb_table, w_note).reshape(L * SIZ, M)
    wtb = jnp.stack([W[:, 0], b], axis=0)                        # (2, M)
    return proj.astype(jnp.float32), wtb.astype(jnp.float32)


def music_encoder_forward(note_ids, tempo, proj, wtb, *, tile_b=None):
    """note_ids: (B, L) int, tempo: (B,) f32, proj/wtb from prepare_params()."""
    Bn = note_ids.shape[0]
    if tile_b is None:
        if Bn >= 256:
            tile_b = 256                      # fills the 256x256 MXU (v6e/v7x)
        elif Bn >= 128:
            tile_b = 128                      # v5e MXU width
        else:
            tile_b = max(8, -(-Bn // 8) * 8)  # sublane-aligned small batch
    b_pad = -(-Bn // tile_b) * tile_b

    ids = note_ids.astype(jnp.int32)
    tmp = tempo.astype(jnp.float32)
    if b_pad != Bn:
        ids = jnp.pad(ids, ((0, b_pad - Bn), (0, 0)))   # pad with index 0 (valid)
        tmp = jnp.pad(tmp, ((0, b_pad - Bn),))
    tmp = tmp.reshape(b_pad, 1)

    cost = pl.CostEstimate(
        flops=2 * b_pad * (L * SIZ) * M + 4 * b_pad * M,
        transcendentals=b_pad * M,
        bytes_accessed=4 * (b_pad * L + b_pad + L * SIZ * M + 2 * M + b_pad * M),
    )

    out = pl.pallas_call(
        music_encoder_kernel,
        out_shape=jax.ShapeDtypeStruct((b_pad, M), jnp.float32),
        grid=(b_pad // tile_b,),
        in_specs=[
            pl.BlockSpec((tile_b, L), lambda i: (i, 0)),
            pl.BlockSpec((tile_b, 1), lambda i: (i, 0)),
            pl.BlockSpec((L * SIZ, M), lambda i: (0, 0)),
            pl.BlockSpec((2, M), lambda i: (0, 0)),
        ],
        out_specs=pl.BlockSpec((tile_b, M), lambda i: (i, 0)),
        compiler_params=pltpu.CompilerParams(dimension_semantics=("parallel",)),
        cost_estimate=cost,
    )(ids, tmp, proj, wtb)
    return out[:Bn]


def music_encoder_reference(note_ids, tempo, emb_table, W, b):
    """Plain-JAX reference matching the PyTorch forward exactly."""
    Bn = note_ids.shape[0]
    note = jnp.take(emb_table, note_ids, axis=0).reshape(Bn, L * EMB)
    hid = jnp.concatenate([tempo.reshape(Bn, 1).astype(jnp.float32), note], axis=1)
    return jax.nn.sigmoid(hid @ W.T + b)


if __name__ == "__main__":
    key = jax.random.PRNGKey(0)
    k_note, k_tempo, k_emb, k_w, k_b = jax.random.split(key, 5)

    # Deterministic inputs.
    note_ids = jax.random.randint(k_note, (B, L), 0, SIZ, dtype=jnp.int32)
    tempo = jax.random.uniform(k_tempo, (B,), dtype=jnp.float32) * 2.0

    # Deterministic parameters (nn.Embedding(SIZ, EMB), nn.Linear(1+L*EMB, M)).
    emb_table = jax.random.normal(k_emb, (SIZ, EMB), dtype=jnp.float32)
    fan_in = 1 + L * EMB
    bound = 1.0 / (fan_in ** 0.5)
    W = jax.random.uniform(k_w, (M, fan_in), minval=-bound, maxval=bound,
                           dtype=jnp.float32)
    b = jax.random.uniform(k_b, (M,), minval=-bound, maxval=bound,
                           dtype=jnp.float32)

    # Parameter re-layout happens ONCE, outside the per-call path.
    proj, wtb = prepare_params(emb_table, W, b)
    proj = jax.block_until_ready(proj)
    wtb = jax.block_until_ready(wtb)

    out = music_encoder_forward(note_ids, tempo, proj, wtb)
    out = jax.block_until_ready(out)

    ref = music_encoder_reference(note_ids, tempo, emb_table, W, b)
    assert out.shape == (B, M)
    assert jnp.allclose(out, ref, atol=1e-5, rtol=1e-5), "mismatch vs reference"

    print("KERNEL_OK")
</pallas_src>

<mosaic_0001>
module attributes {stable_mosaic.version = 11 : i64} {
  func.func @music_encoder_kernel(%arg0: i32, %arg1: memref<8x8xi32, #tpu.memory_space<vmem>>, %arg2: memref<8x1xf32, #tpu.memory_space<vmem>>, %arg3: memref<320x32xf32, #tpu.memory_space<vmem>>, %arg4: memref<2x32xf32, #tpu.memory_space<vmem>>, %arg5: memref<8x32xf32, #tpu.memory_space<vmem>>) attributes {dimension_semantics = [#tpu.dimension_semantics<parallel>], iteration_bounds = array<i64: 1>, scalar_prefetch = 0 : i64, scratch_operands = 0 : i64, tpu.core_type = #tpu.core_type<tc>, window_params = [{transform_indices = @transform_0, window_bounds = array<i64: 8, 8>}, {transform_indices = @transform_1, window_bounds = array<i64: 8, 1>}, {pipeline_mode = #tpu.pipeline_mode<synchronous>, transform_indices = @transform_2, window_bounds = array<i64: 320, 32>}, {pipeline_mode = #tpu.pipeline_mode<synchronous>, transform_indices = @transform_3, window_bounds = array<i64: 2, 32>}, {transform_indices = @transform_4, window_bounds = array<i64: 8, 32>}]} {
    %c0 = arith.constant 0 : index
    %c0_0 = arith.constant 0 : index
    %0 = vector.load %arg1[%c0, %c0_0] : memref<8x8xi32, #tpu.memory_space<vmem>>, vector<8x8xi32>
    %1 = tpu.iota {dimensions = array<i32: 1>} : vector<8x320xi32>
    %2 = vector.extract_strided_slice %0 {offsets = [0, 0], sizes = [8, 1], strides = [1, 1]} : vector<8x8xi32> to vector<8x1xi32>
    %3 = vector.broadcast %2 : vector<8x1xi32> to vector<8x320xi32>
    %4 = arith.cmpi eq, %1, %3 : vector<8x320xi32>
    %5 = arith.extui %4 : vector<8x320xi1> to vector<8x320xi32>
    %6 = arith.sitofp %5 : vector<8x320xi32> to vector<8x320xf32>
    %7 = vector.extract_strided_slice %0 {offsets = [0, 1], sizes = [8, 1], strides = [1, 1]} : vector<8x8xi32> to vector<8x1xi32>
    %c40_i32 = arith.constant 40 : i32
    %8 = vector.broadcast %c40_i32 : i32 to vector<8x1xi32>
    %9 = arith.addi %7, %8 : vector<8x1xi32>
    %10 = vector.broadcast %9 : vector<8x1xi32> to vector<8x320xi32>
    %11 = arith.cmpi eq, %1, %10 : vector<8x320xi32>
    %12 = arith.extui %11 : vector<8x320xi1> to vector<8x320xi32>
    %13 = arith.sitofp %12 : vector<8x320xi32> to vector<8x320xf32>
    %14 = arith.addf %6, %13 : vector<8x320xf32>
    %15 = vector.extract_strided_slice %0 {offsets = [0, 2], sizes = [8, 1], strides = [1, 1]} : vector<8x8xi32> to vector<8x1xi32>
    %c80_i32 = arith.constant 80 : i32
    %16 = vector.broadcast %c80_i32 : i32 to vector<8x1xi32>
    %17 = arith.addi %15, %16 : vector<8x1xi32>
    %18 = vector.broadcast %17 : vector<8x1xi32> to vector<8x320xi32>
    %19 = arith.cmpi eq, %1, %18 : vector<8x320xi32>
    %20 = arith.extui %19 : vector<8x320xi1> to vector<8x320xi32>
    %21 = arith.sitofp %20 : vector<8x320xi32> to vector<8x320xf32>
    %22 = arith.addf %14, %21 : vector<8x320xf32>
    %23 = vector.extract_strided_slice %0 {offsets = [0, 3], sizes = [8, 1], strides = [1, 1]} : vector<8x8xi32> to vector<8x1xi32>
    %c120_i32 = arith.constant 120 : i32
    %24 = vector.broadcast %c120_i32 : i32 to vector<8x1xi32>
    %25 = arith.addi %23, %24 : vector<8x1xi32>
    %26 = vector.broadcast %25 : vector<8x1xi32> to vector<8x320xi32>
    %27 = arith.cmpi eq, %1, %26 : vector<8x320xi32>
    %28 = arith.extui %27 : vector<8x320xi1> to vector<8x320xi32>
    %29 = arith.sitofp %28 : vector<8x320xi32> to vector<8x320xf32>
    %30 = arith.addf %22, %29 : vector<8x320xf32>
    %31 = vector.extract_strided_slice %0 {offsets = [0, 4], sizes = [8, 1], strides = [1, 1]} : vector<8x8xi32> to vector<8x1xi32>
    %c160_i32 = arith.constant 160 : i32
    %32 = vector.broadcast %c160_i32 : i32 to vector<8x1xi32>
    %33 = arith.addi %31, %32 : vector<8x1xi32>
    %34 = vector.broadcast %33 : vector<8x1xi32> to vector<8x320xi32>
    %35 = arith.cmpi eq, %1, %34 : vector<8x320xi32>
    %36 = arith.extui %35 : vector<8x320xi1> to vector<8x320xi32>
    %37 = arith.sitofp %36 : vector<8x320xi32> to vector<8x320xf32>
    %38 = arith.addf %30, %37 : vector<8x320xf32>
    %39 = vector.extract_strided_slice %0 {offsets = [0, 5], sizes = [8, 1], strides = [1, 1]} : vector<8x8xi32> to vector<8x1xi32>
    %c200_i32 = arith.constant 200 : i32
    %40 = vector.broadcast %c200_i32 : i32 to vector<8x1xi32>
    %41 = arith.addi %39, %40 : vector<8x1xi32>
    %42 = vector.broadcast %41 : vector<8x1xi32> to vector<8x320xi32>
    %43 = arith.cmpi eq, %1, %42 : vector<8x320xi32>
    %44 = arith.extui %43 : vector<8x320xi1> to vector<8x320xi32>
    %45 = arith.sitofp %44 : vector<8x320xi32> to vector<8x320xf32>
    %46 = arith.addf %38, %45 : vector<8x320xf32>
    %47 = vector.extract_strided_slice %0 {offsets = [0, 6], sizes = [8, 1], strides = [1, 1]} : vector<8x8xi32> to vector<8x1xi32>
    %c240_i32 = arith.constant 240 : i32
    %48 = vector.broadcast %c240_i32 : i32 to vector<8x1xi32>
    %49 = arith.addi %47, %48 : vector<8x1xi32>
    %50 = vector.broadcast %49 : vector<8x1xi32> to vector<8x320xi32>
    %51 = arith.cmpi eq, %1, %50 : vector<8x320xi32>
    %52 = arith.extui %51 : vector<8x320xi1> to vector<8x320xi32>
    %53 = arith.sitofp %52 : vector<8x320xi32> to vector<8x320xf32>
    %54 = arith.addf %46, %53 : vector<8x320xf32>
    %55 = vector.extract_strided_slice %0 {offsets = [0, 7], sizes = [8, 1], strides = [1, 1]} : vector<8x8xi32> to vector<8x1xi32>
    %c280_i32 = arith.constant 280 : i32
    %56 = vector.broadcast %c280_i32 : i32 to vector<8x1xi32>
    %57 = arith.addi %55, %56 : vector<8x1xi32>
    %58 = vector.broadcast %57 : vector<8x1xi32> to vector<8x320xi32>
    %59 = arith.cmpi eq, %1, %58 : vector<8x320xi32>
    %60 = arith.extui %59 : vector<8x320xi1> to vector<8x320xi32>
    %61 = arith.sitofp %60 : vector<8x320xi32> to vector<8x320xf32>
    %62 = arith.addf %54, %61 : vector<8x320xf32>
    %c0_1 = arith.constant 0 : index
    %c0_2 = arith.constant 0 : index
    %63 = vector.load %arg3[%c0_1, %c0_2] : memref<320x32xf32, #tpu.memory_space<vmem>>, vector<320x32xf32>
    %cst = arith.constant dense<0.000000e+00> : vector<8x32xf32>
    %64 = tpu.matmul %62, %63, %cst {dimension_numbers = #tpu.dot_dimension_numbers<[1], [0], [0], [1], [0, 0, 1, 1], [], []>} : vector<8x320xf32>, vector<320x32xf32>, vector<8x32xf32> -> vector<8x32xf32>
    %c0_3 = arith.constant 0 : index
    %c0_4 = arith.constant 0 : index
    %65 = vector.load %arg4[%c0_3, %c0_4] : memref<2x32xf32, #tpu.memory_space<vmem>>, vector<2x32xf32>
    %c0_5 = arith.constant 0 : index
    %c0_6 = arith.constant 0 : index
    %66 = vector.load %arg2[%c0_5, %c0_6] : memref<8x1xf32, #tpu.memory_space<vmem>>, vector<8x1xf32>
    %67 = vector.extract_strided_slice %65 {offsets = [0, 0], sizes = [1, 32], strides = [1, 1]} : vector<2x32xf32> to vector<1x32xf32>
    %68 = vector.broadcast %66 : vector<8x1xf32> to vector<8x32xf32>
    %69 = vector.broadcast %67 : vector<1x32xf32> to vector<8x32xf32>
    %70 = arith.mulf %68, %69 : vector<8x32xf32>
    %71 = arith.addf %64, %70 : vector<8x32xf32>
    %72 = vector.extract_strided_slice %65 {offsets = [1, 0], sizes = [1, 32], strides = [1, 1]} : vector<2x32xf32> to vector<1x32xf32>
    %73 = vector.broadcast %72 : vector<1x32xf32> to vector<8x32xf32>
    %74 = arith.addf %71, %73 : vector<8x32xf32>
    %75 = arith.negf %74 : vector<8x32xf32>
    %76 = math.exp %75 : vector<8x32xf32>
    %cst_7 = arith.constant 1.000000e+00 : f32
    %77 = vector.broadcast %cst_7 : f32 to vector<8x32xf32>
    %78 = arith.addf %77, %76 : vector<8x32xf32>
    %79 = arith.divf %77, %78 : vector<8x32xf32>
    %c0_8 = arith.constant 0 : index
    %c0_9 = arith.constant 0 : index
    %80 = vector.load %arg5[%c0_8, %c0_9] : memref<8x32xf32, #tpu.memory_space<vmem>>, vector<8x32xf32>
    tpu.vector_store %arg5[%c0_8, %c0_9], %79 {strides = array<i32>} : memref<8x32xf32, #tpu.memory_space<vmem>>, vector<8x32xf32>,
    return
  }
  func.func @transform_0(%arg0: i32) -> (i32, i32) {
    %c0_i32 = arith.constant 0 : i32
    %c0_i32_0 = arith.constant 0 : i32
    return %arg0, %c0_i32 : i32, i32
  }
  func.func @transform_1(%arg0: i32) -> (i32, i32) {
    %c0_i32 = arith.constant 0 : i32
    %c0_i32_0 = arith.constant 0 : i32
    return %arg0, %c0_i32 : i32, i32
  }
  func.func @transform_2(%arg0: i32) -> (i32, i32) {
    %c0_i32 = arith.constant 0 : i32
    %c0_i32_0 = arith.constant 0 : i32
    %c0_i32_1 = arith.constant 0 : i32
    return %c0_i32, %c0_i32_0 : i32, i32
  }
  func.func @transform_3(%arg0: i32) -> (i32, i32) {
    %c0_i32 = arith.constant 0 : i32
    %c0_i32_0 = arith.constant 0 : i32
    %c0_i32_1 = arith.constant 0 : i32
    return %c0_i32, %c0_i32_0 : i32, i32
  }
  func.func @transform_4(%arg0: i32) -> (i32, i32) {
    %c0_i32 = arith.constant 0 : i32
    %c0_i32_0 = arith.constant 0 : i32
    return %arg0, %c0_i32 : i32, i32
  }
}

</mosaic_0001>

<llo_original>
// kernel: tpu_custom_call.1
$region0: #{tpu_custom_call.1}
  #allocation0 [shape = 'u32[]', space=smem, size = 0x4, offset = 0x4, fixed_abs, tag = 'smem constant byte address 0x4 - core index']
  #allocation1 [shape = 'u32[144,128]{1,0:T(1,128)}', space=vmem, size = 0x12000, scoped, tag = 'internal scratch']
  %s0 = inlined_call_operand.vmem [shape: s32[8,8], index: 0, kind: input, shape index: {}]
  %s1 = inlined_call_operand.vmem [shape: f32[8,1], index: 1, kind: input, shape index: {}]
  %s2 = inlined_call_operand.vmem [shape: f32[320,32], index: 2, kind: input, shape index: {}]
  %s3 = inlined_call_operand.vmem [shape: f32[2,32], index: 3, kind: input, shape index: {}]
  %s4 = inlined_call_operand.hbm [shape: f32[8,32], index: 4, kind: output, shape index: {}]
  %s5 = sld [smem:[#allocation0]]
  $region26: #{tpu_custom_call.1} parent=0
    _
  %s7 = ssub.s32 1, %s5
  %s8 = scalar_select 0, %s7, %s5
  $region1: #{tpu_custom_call.1} parent=0
    #allocation2 [shape = 'u8[4096]{0}', space=vmem, size = 0x1000, scoped, tag = 'output window, operand 0, single buffered']
    #allocation3 [shape = 's32[1]{0}', space=sflag, size = 0x4, scoped, tag = 'scoped memory for tpu_custom_call.1']
    %9 = vsyncpa [#allocation3], 0
    // Predicated region
    $region2: #{tpu_custom_call.1} parent=1 // pred_check
      _
    $region3: #{tpu_custom_call.1} parent=1 // pred_check_branch
      %11 = sbr.rel (0) target = $region5
    $region4: #{tpu_custom_call.1} parent=1 // pred_region
      _
    $region5: #{tpu_custom_call.1} parent=1 // pred_fallthru
      _
    // Predicated region
    $region6: #{tpu_custom_call.1} parent=1 // pred_check
      _
    $region7: #{tpu_custom_call.1} parent=1 // pred_check_branch
      %13 = sbr.rel (0) target = $region9
    $region8: #{tpu_custom_call.1} parent=1 // pred_region
      _
    $region9: #{tpu_custom_call.1} parent=1 // pred_fallthru
      _
    // Predicated region
    $region10: #{tpu_custom_call.1} parent=1 // pred_check
      _
    $region11: #{tpu_custom_call.1} parent=1 // pred_check_branch
      %15 = sbr.rel (0) target = $region13
    $region12: #{tpu_custom_call.1} parent=1 // pred_region
      _
    $region13: #{tpu_custom_call.1} parent=1 // pred_fallthru
      _
    // Predicated region
    $region14: #{tpu_custom_call.1} parent=1 // pred_check
      _
    $region15: #{tpu_custom_call.1} parent=1 // pred_check_branch
      %17 = sbr.rel (0) target = $region17
    $region16: #{tpu_custom_call.1} parent=1 // pred_region
      _
    $region17: #{tpu_custom_call.1} parent=1 // pred_fallthru
      _
    %v18 = vld [vmem:[%s0] sm:$0xff]
    %v19 = vlaneseq
    %v20 = vand.u32 %v19, 127
    %v21 = vadd.s32 %v20, 128
    %v22 = vadd.s32 %v20, 256
    %23 = vset.pattern.permute.xlu0 0
    %24 = vperm.xlu0 %23, %v18
    %v25 = vpop.permute.xlu0 %24
    %vm26 = vcmp.eq.s32.totalorder %v20, %v25
    %vm27 = vcmp.eq.s32.totalorder %v21, %v25
    %vm28 = vcmp.eq.s32.totalorder %v22, %v25
    %v29 = vsel %vm26, 1, 0
    %v30 = vsel %vm27, 1, 0
    %v31 = vsel %vm28, 1, 0
    %v32 = vcvt.s32.f32 %v29
    %v33 = vcvt.s32.f32 %v30
    %v34 = vcvt.s32.f32 %v31
    %v35 = vadd.s32 %v18, 40
    %36 = vset.pattern.permute.xlu0 1
    %37 = vperm.xlu0 %36, %v35
    %v38 = vpop.permute.xlu0 %37
    %vm39 = vcmp.eq.s32.totalorder %v20, %v38
    %vm40 = vcmp.eq.s32.totalorder %v21, %v38
    %vm41 = vcmp.eq.s32.totalorder %v22, %v38
    %v42 = vsel %vm39, 1, 0
    %v43 = vsel %vm40, 1, 0
    %v44 = vsel %vm41, 1, 0
    %v45 = vcvt.s32.f32 %v42
    %v46 = vcvt.s32.f32 %v43
    %v47 = vcvt.s32.f32 %v44
    %v48 = vadd.f32 %v32, %v45
    %v49 = vadd.f32 %v33, %v46
    %v50 = vadd.f32 %v34, %v47
    %v51 = vadd.s32 %v18, 80
    %52 = vset.pattern.permute.xlu0 2
    %53 = vperm.xlu0 %52, %v51
    %v54 = vpop.permute.xlu0 %53
    %vm55 = vcmp.eq.s32.totalorder %v20, %v54
    %vm56 = vcmp.eq.s32.totalorder %v21, %v54
    %vm57 = vcmp.eq.s32.totalorder %v22, %v54
    %v58 = vsel %vm55, 1, 0
    %v59 = vsel %vm56, 1, 0
    %v60 = vsel %vm57, 1, 0
    %v61 = vcvt.s32.f32 %v58
    %v62 = vcvt.s32.f32 %v59
    %v63 = vcvt.s32.f32 %v60
    %v64 = vadd.f32 %v48, %v61
    %v65 = vadd.f32 %v49, %v62
    %v66 = vadd.f32 %v50, %v63
    %v67 = vadd.s32 %v18, 120
    %68 = vset.pattern.permute.xlu0 3
    %69 = vperm.xlu0 %68, %v67
    %v70 = vpop.permute.xlu0 %69
    %vm71 = vcmp.eq.s32.totalorder %v20, %v70
    %vm72 = vcmp.eq.s32.totalorder %v21, %v70
    %vm73 = vcmp.eq.s32.totalorder %v22, %v70
    %v74 = vsel %vm71, 1, 0
    %v75 = vsel %vm72, 1, 0
    %v76 = vsel %vm73, 1, 0
    %v77 = vcvt.s32.f32 %v74
    %v78 = vcvt.s32.f32 %v75
    %v79 = vcvt.s32.f32 %v76
    %v80 = vadd.f32 %v64, %v77
    %v81 = vadd.f32 %v65, %v78
    %v82 = vadd.f32 %v66, %v79
    %v83 = vadd.s32 %v18, 160
    %84 = vset.pattern.permute.xlu0 4
    %85 = vperm.xlu0 %84, %v83
    %v86 = vpop.permute.xlu0 %85
    %vm87 = vcmp.eq.s32.totalorder %v20, %v86
    %vm88 = vcmp.eq.s32.totalorder %v21, %v86
    %vm89 = vcmp.eq.s32.totalorder %v22, %v86
    %v90 = vsel %vm87, 1, 0
    %v91 = vsel %vm88, 1, 0
    %v92 = vsel %vm89, 1, 0
    %v93 = vcvt.s32.f32 %v90
    %v94 = vcvt.s32.f32 %v91
    %v95 = vcvt.s32.f32 %v92
    %v96 = vadd.f32 %v80, %v93
    %v97 = vadd.f32 %v81, %v94
    %v98 = vadd.f32 %v82, %v95
    %v99 = vadd.s32 %v18, 200
    %100 = vset.pattern.permute.xlu0 5
    %101 = vperm.xlu0 %100, %v99
    %v102 = vpop.permute.xlu0 %101
    %vm103 = vcmp.eq.s32.totalorder %v20, %v102
    %vm104 = vcmp.eq.s32.totalorder %v21, %v102
    %vm105 = vcmp.eq.s32.totalorder %v22, %v102
    %v106 = vsel %vm103, 1, 0
    %v107 = vsel %vm104, 1, 0
    %v108 = vsel %vm105, 1, 0
    %v109 = vcvt.s32.f32 %v106
    %v110 = vcvt.s32.f32 %v107
    %v111 = vcvt.s32.f32 %v108
    %v112 = vadd.f32 %v96, %v109
    %v113 = vadd.f32 %v97, %v110
    %v114 = vadd.f32 %v98, %v111
    %v115 = vadd.s32 %v18, 240
    %116 = vset.pattern.permute.xlu0 6
    %117 = vperm.xlu0 %116, %v115
    %v118 = vpop.permute.xlu0 %117
    %vm119 = vcmp.eq.s32.totalorder %v20, %v118
    %vm120 = vcmp.eq.s32.totalorder %v21, %v118
    %vm121 = vcmp.eq.s32.totalorder %v22, %v118
    %v122 = vsel %vm119, 1, 0
    %v123 = vsel %vm120, 1, 0
    %v124 = vsel %vm121, 1, 0
    %v125 = vcvt.s32.f32 %v122
    %v126 = vcvt.s32.f32 %v123
    %v127 = vcvt.s32.f32 %v124
    %v128 = vadd.f32 %v112, %v125
    %v129 = vadd.f32 %v113, %v126
    %v130 = vadd.f32 %v114, %v127
    %v131 = vadd.s32 %v18, 280
    %132 = vset.pattern.permute.xlu0 7
    %133 = vperm.xlu0 %132, %v131
    %v134 = vpop.permute.xlu0 %133
    %vm135 = vcmp.eq.s32.totalorder %v20, %v134
    %vm136 = vcmp.eq.s32.totalorder %v21, %v134
    %vm137 = vcmp.eq.s32.totalorder %v22, %v134
    %v138 = vsel %vm135, 1, 0
    %v139 = vsel %vm136, 1, 0
    %v140 = vsel %vm137, 1, 0
    %v141 = vcvt.s32.f32 %v138
    %v142 = vcvt.s32.f32 %v139
    %v143 = vcvt.s32.f32 %v140
    %v144 = vadd.f32 %v128, %v141
    %v145 = vadd.f32 %v129, %v142
    %v146 = vadd.f32 %v130, %v143
    %v147 = vld [vmem:[%s2] sm:$0xff]
    %v148 = vld [vmem:[%s2 + $0x8] sm:$0xff]
    %v149 = vld [vmem:[%s2 + $0x10] sm:$0xff]
    %v150 = vld [vmem:[%s2 + $0x18] sm:$0xff]
    %v151 = vld [vmem:[%s2 + $0x20] sm:$0xff]
    %v152 = vld [vmem:[%s2 + $0x28] sm:$0xff]
    %v153 = vld [vmem:[%s2 + $0x30] sm:$0xff]
    %v154 = vld [vmem:[%s2 + $0x38] sm:$0xff]
    %v155 = vld [vmem:[%s2 + $0x40] sm:$0xff]
    %v156 = vld [vmem:[%s2 + $0x48] sm:$0xff]
    %v157 = vld [vmem:[%s2 + $0x50] sm:$0xff]
    %v158 = vld [vmem:[%s2 + $0x58] sm:$0xff]
    %v159 = vld [vmem:[%s2 + $0x60] sm:$0xff]
    %v160 = vld [vmem:[%s2 + $0x68] sm:$0xff]
    %v161 = vld [vmem:[%s2 + $0x70] sm:$0xff]
    %v162 = vld [vmem:[%s2 + $0x78] sm:$0xff]
    %v163 = vld [vmem:[%s2 + $0x80] sm:$0xff]
    %v164 = vld [vmem:[%s2 + $0x88] sm:$0xff]
    %v165 = vld [vmem:[%s2 + $0x90] sm:$0xff]
    %v166 = vld [vmem:[%s2 + $0x98] sm:$0xff]
    %v167 = vld [vmem:[%s2 + $0xa0] sm:$0xff]
    %v168 = vld [vmem:[%s2 + $0xa8] sm:$0xff]
    %v169 = vld [vmem:[%s2 + $0xb0] sm:$0xff]
    %v170 = vld [vmem:[%s2 + $0xb8] sm:$0xff]
    %v171 = vld [vmem:[%s2 + $0xc0] sm:$0xff]
    %v172 = vld [vmem:[%s2 + $0xc8] sm:$0xff]
    %v173 = vld [vmem:[%s2 + $0xd0] sm:$0xff]
    %v174 = vld [vmem:[%s2 + $0xd8] sm:$0xff]
    %v175 = vld [vmem:[%s2 + $0xe0] sm:$0xff]
    %v176 = vld [vmem:[%s2 + $0xe8] sm:$0xff]
    %v177 = vld [vmem:[%s2 + $0xf0] sm:$0xff]
    %v178 = vld [vmem:[%s2 + $0xf8] sm:$0xff]
    %v179 = vld [vmem:[%s2 + $0x100] sm:$0xff]
    %v180 = vld [vmem:[%s2 + $0x108] sm:$0xff]
    %v181 = vld [vmem:[%s2 + $0x110] sm:$0xff]
    %v182 = vld [vmem:[%s2 + $0x118] sm:$0xff]
    %v183 = vld [vmem:[%s2 + $0x120] sm:$0xff]
    %v184 = vld [vmem:[%s2 + $0x128] sm:$0xff]
    %v185 = vld [vmem:[%s2 + $0x130] sm:$0xff]
    %v186 = vld [vmem:[%s2 + $0x138] sm:$0xff]
    %v187 = vld [vmem:[%s3] sm:$0x3]
    %v188 = vld [vmem:[%s1] sm:$0xff]
    %190 = vset.pattern.permute.xlu0 0
    %191 = vperm.xlu0 %190, %v188
    %v192 = vpop.permute.xlu0 %191
    %v194 = vlaneseq
    %v195 = vshrl.u32 %v194, 7
    %v196 = vsub.s32 0, %v195
    %v197 = vrot.slane %v187, %v196
    %v198 = vmul.f32 %v192, %v197
    %vm199 = vcmask 523264
    %v201 = vsel %vm199, %v146, 0
    %203 = vmatprep.subr.mxu0 0.0
    %204 = vmatpush1.msra.mxu0 %v147
    %205 = vmatprep.subr.mxu0 0.0
    %206 = vmatpush1.msra.mxu0 %v148
    %207 = vmatprep.subr.mxu0 0.0
    %208 = vmatpush1.msra.mxu0 %v149
    %209 = vmatprep.subr.mxu0 0.0
    %210 = vmatpush1.msra.mxu0 %v150
    %211 = vmatprep.subr.mxu0 0.0
    %212 = vmatpush1.msra.mxu0 %v151
    %213 = vmatprep.subr.mxu0 0.0
    %214 = vmatpush1.msra.mxu0 %v152
    %215 = vmatprep.subr.mxu0 0.0
    %216 = vmatpush1.msra.mxu0 %v153
    %217 = vmatprep.subr.mxu0 0.0
    %218 = vmatpush1.msra.mxu0 %v154
    %219 = vmatprep.subr.mxu0 0.0
    %220 = vmatpush1.msra.mxu0 %v155
    %221 = vmatprep.subr.mxu0 0.0
    %222 = vmatpush1.msra.mxu0 %v156
    %223 = vmatprep.subr.mxu0 0.0
    %224 = vmatpush1.msra.mxu0 %v157
    %225 = vmatprep.subr.mxu0 0.0
    %226 = vmatpush1.msra.mxu0 %v158
    %227 = vmatprep.subr.mxu0 0.0
    %228 = vmatpush1.msra.mxu0 %v159
    %229 = vmatprep.subr.mxu0 0.0
    %230 = vmatpush1.msra.mxu0 %v160
    %231 = vmatprep.subr.mxu0 0.0
    %232 = vmatpush1.msra.mxu0 %v161
    %233 = vmatprep.subr.mxu0 0.0
    %234 = vmatpush1.msra.mxu0 %v162
    %235 = vmatprep.subr.mxu0 0.0
    %236 = vmatpush1.msra.mxu0 %v163
    %237 = vmatprep.subr.mxu0 0.0
    %238 = vmatpush1.msra.mxu0 %v164
    %239 = vmatprep.subr.mxu0 0.0
    %240 = vmatpush1.msra.mxu0 %v165
    %241 = vmatprep.subr.mxu0 0.0
    %242 = vmatpush1.msra.mxu0 %v166
    %243 = vmatprep.subr.mxu0 0.0
    %244 = vmatpush1.msra.mxu0 %v167
    %245 = vmatprep.subr.mxu0 0.0
    %246 = vmatpush1.msra.mxu0 %v168
    %247 = vmatprep.subr.mxu0 0.0
    %248 = vmatpush1.msra.mxu0 %v169
    %249 = vmatprep.subr.mxu0 0.0
    %250 = vmatpush1.msra.mxu0 %v170
    %251 = vmatprep.subr.mxu0 0.0
    %252 = vmatpush1.msra.mxu0 %v171
    %253 = vmatprep.subr.mxu0 0.0
    %254 = vmatpush1.msra.mxu0 %v172
    %255 = vmatprep.subr.mxu0 0.0
    %256 = vmatpush1.msra.mxu0 %v173
    %257 = vmatprep.subr.mxu0 0.0
    %258 = vmatpush1.msra.mxu0 %v174
    %259 = vmatprep.subr.mxu0 0.0
    %260 = vmatpush1.msra.mxu0 %v175
    %261 = vmatprep.subr.mxu0 0.0
    %262 = vmatpush1.msra.mxu0 %v176
    %263 = vmatprep.subr.mxu0 0.0
    %264 = vmatpush1.msra.mxu0 %v177
    %265 = vmatprep.subr.mxu0 0.0
    %266 = vmatpush1.msra.mxu0 %v178
    %267 = vmatprep.mubr.f32.mxu0 %v145
    %268 = vmatmul.mubr.f32.gmra.mrb[0].mxu0 %v144
    %v269 = vpop.f32.mrb[0].mxu0
    %v270 = vadd.f32 %v198, %v269
    %v271 = vpop.f32.mrb[0].mxu0
    %272 = vdwg.mxu0
    %273 = vmatprep.subr.mxu0 0.0
    %274 = vmatpush1.msra.mxu0 %v179
    %275 = vmatprep.subr.mxu0 0.0
    %276 = vmatpush1.msra.mxu0 %v180
    %277 = vmatprep.subr.mxu0 0.0
    %278 = vmatpush1.msra.mxu0 %v181
    %279 = vmatprep.subr.mxu0 0.0
    %280 = vmatpush1.msra.mxu0 %v182
    %281 = vmatprep.subr.mxu0 0.0
    %282 = vmatpush1.msra.mxu0 %v183
    %283 = vmatprep.subr.mxu0 0.0
    %284 = vmatpush1.msra.mxu0 %v184
    %285 = vmatprep.subr.mxu0 0.0
    %286 = vmatpush1.msra.mxu0 %v185
    %287 = vmatprep.subr.mxu0 0.0
    %288 = vmatpush1.msra.mxu0 %v186
    %289 = vmatprep.subr.mxu0 0.0
    %290 = vmatpush1.msra.mxu0 0.0
    %291 = vmatprep.subr.mxu0 0.0
    %292 = vmatpush1.msra.mxu0 0.0
    %293 = vmatprep.subr.mxu0 0.0
    %294 = vmatpush1.msra.mxu0 0.0
    %295 = vmatprep.subr.mxu0 0.0
    %296 = vmatpush1.msra.mxu0 0.0
    %297 = vmatprep.subr.mxu0 0.0
    %298 = vmatpush1.msra.mxu0 0.0
    %299 = vmatprep.subr.mxu0 0.0
    %300 = vmatpush1.msra.mxu0 0.0
    %301 = vmatprep.subr.mxu0 0.0
    %302 = vmatpush1.msra.mxu0 0.0
    %303 = vmatprep.subr.mxu0 0.0
    %304 = vmatpush1.msra.mxu0 0.0
    %305 = vmatprep.subr.mxu0 0.0
    %306 = vmatpush1.msra.mxu0 0.0
    %307 = vmatprep.subr.mxu0 0.0
    %308 = vmatpush1.msra.mxu0 0.0
    %309 = vmatprep.subr.mxu0 0.0
    %310 = vmatpush1.msra.mxu0 0.0
    %311 = vmatprep.subr.mxu0 0.0
    %312 = vmatpush1.msra.mxu0 0.0
    %313 = vmatprep.subr.mxu0 0.0
    %314 = vmatpush1.msra.mxu0 0.0
    %315 = vmatprep.subr.mxu0 0.0
    %316 = vmatpush1.msra.mxu0 0.0
    %317 = vmatprep.subr.mxu0 0.0
    %318 = vmatpush1.msra.mxu0 0.0
    %319 = vmatprep.subr.mxu0 0.0
    %320 = vmatpush1.msra.mxu0 0.0
    %321 = vmatprep.subr.mxu0 0.0
    %322 = vmatpush1.msra.mxu0 0.0
    %323 = vmatprep.subr.mxu0 0.0
    %324 = vmatpush1.msra.mxu0 0.0
    %325 = vmatprep.subr.mxu0 0.0
    %326 = vmatpush1.msra.mxu0 0.0
    %327 = vmatprep.subr.mxu0 0.0
    %328 = vmatpush1.msra.mxu0 0.0
    %329 = vmatprep.subr.mxu0 0.0
    %330 = vmatpush1.msra.mxu0 0.0
    %331 = vmatprep.subr.mxu0 0.0
    %332 = vmatpush1.msra.mxu0 0.0
    %333 = vmatprep.subr.mxu0 0.0
    %334 = vmatpush1.msra.mxu0 0.0
    %335 = vmatprep.subr.mxu0 0.0
    %336 = vmatpush1.msra.mxu0 0.0
    %337 = vmatprep.mubr.f32.mxu0 0.0
    %338 = vmatmul.mubr.f32.gmra.mrb[0].mxu0 %v201
    %v339 = vpop.f32.mrb[0].mxu0
    %v340 = vadd.f32 %v270, %v339
    %v341 = vpop.f32.mrb[0].mxu0
    %342 = vdwg.mxu0
    %v343 = vlaneseq
    %v344 = vshrl.u32 %v343, 7
    %v345 = vsub.s32 1, %v344
    %v346 = vrot.slane %v187, %v345
    %v347 = vadd.f32 %v340, %v346
    %v348 = vxor.u32 %v347, 2147483648
    %v349 = vmul.f32 %v348, 1.442695
    %v350 = vpow.pop %v349
    %v351 = vadd.f32 %v350, 1.0
    %v352 = vrcp.pop %v351
    %v353 = vmul.f32 1.0, %v352
    %vm354 = vcmask 261120
    %355 = vst.msk [vmem:[#allocation2] sm:$0xff] %vm354, %v353
    // Predicated region
    $region18: #{tpu_custom_call.1} parent=1 // pred_check
      _
    $region19: #{tpu_custom_call.1} parent=1 // pred_check_branch
      %357 = sbr.rel (0) target = $region21
    $region20: #{tpu_custom_call.1} parent=1 // pred_region
      %s359 = ssub.s32 128, 128
      %360 = vsyncadd [#allocation3], %s359
      %s362 = sshll.u32 [#allocation2], 4
      %s363 = int_to_ptr.vmem [resolvable:$true] %s362
      %365 = dma.vmem_to_hbm [thread:$0]  %s363, 128, %s4, [#allocation3]
    $region21: #{tpu_custom_call.1} parent=1 // pred_fallthru
      _
    // Predicated region
    $region22: #{tpu_custom_call.1} parent=1 // pred_check
      _
    $region23: #{tpu_custom_call.1} parent=1 // pred_check_branch
      %367 = sbr.rel (0) target = $region25
    $region24: #{tpu_custom_call.1} parent=1 // pred_region
      %368 = dma.done [#allocation3], 128
    $region25: #{tpu_custom_call.1} parent=1 // pred_fallthru
      _
    %369 = vsyncpa [#allocation3], 1

</llo_original>
